<compile_context>
chip_gen: v6e
topology: v6e:2x2x1
jax: 0.10.0
libtpu: 0.0.40
codegen_flags: <defaults>
</compile_context>

<pallas_src>
import jax
import jax.numpy as jnp
from jax.experimental import pallas as pl
from jax.experimental.pallas import tpu as pltpu


_LANE = 128          # lane width: pad weight output dims to multiples of this
_SUBLANE_BF16 = 16   # bf16 vreg packs 16 rows per sublane group
_TB_CAP = 512        # max batch tile (double-buffered x/out tiles stay < 1 MiB)


def _round_up(n, m):
    return ((n + m - 1) // m) * m


def _pad2d(a, rows, cols):
    return jnp.pad(a, ((0, rows - a.shape[0]), (0, cols - a.shape[1])))


# -----------------------------------------------------------------------------
# Kernel: fused fc1 -> ReLU -> fc2 -> ReLU -> fcN on one batch tile.
# -----------------------------------------------------------------------------
def dqn_kernel(x_ref, w1_ref, b1_ref, w2_ref, b2_ref, w3_ref, b3_ref, o_ref):
    # fc1: cast x to bf16 in-kernel, bf16 operands on the MXU, f32 accumulation.
    x = x_ref[...].astype(jnp.bfloat16)
    h = jnp.dot(x, w1_ref[...], preferred_element_type=jnp.float32)
    h = jnp.maximum(h + b1_ref[...], 0.0)
    # dropout(p=0.0) == identity
    # TODO(synk): stochastic dropout (p>0) would need pltpu.prng_seed /
    #             pltpu.prng_random_bits; module default is 0.0 so skipped.
    # fc2 + relu (downcast activations to bf16 for the MXU, accumulate in f32)
    h = jnp.dot(h.astype(jnp.bfloat16), w2_ref[...],
                preferred_element_type=jnp.float32)
    h = jnp.maximum(h + b2_ref[...], 0.0)
    # fcN (no activation)
    out = jnp.dot(h.astype(jnp.bfloat16), w3_ref[...],
                  preferred_element_type=jnp.float32)
    o_ref[...] = (out + b3_ref[...]).astype(o_ref.dtype)


# -----------------------------------------------------------------------------
# One-time parameter preparation (hoisted out of the per-call forward path).
# Zero-padded weight/bias columns are inert through ReLU, so padded channels
# contribute exactly zero; the output slice restores the true shape.
# -----------------------------------------------------------------------------
def prepare_params(params):
    """Pad feature dims to lane multiples and cast weights to bf16 — do ONCE.

    Returns (prepared_dict, output_size).
    """
    w1, b1 = params["w1"], params["b1"]
    w2, b2 = params["w2"], params["b2"]
    w3, b3 = params["w3"], params["b3"]
    in_size, h0 = w1.shape
    h1 = w2.shape[1]
    out_size = w3.shape[1]

    h0_p = _round_up(h0, _LANE)
    h1_p = _round_up(h1, _LANE)
    out_p = _round_up(out_size, _LANE)

    bf16 = jnp.bfloat16
    prepared = dict(
        # K of w1 stays at the true input width (x is not lane-padded).
        w1=_pad2d(w1, in_size, h0_p).astype(bf16),
        w2=_pad2d(w2, h0_p, h1_p).astype(bf16),
        w3=_pad2d(w3, h1_p, out_p).astype(bf16),
        b1=_pad2d(b1, 1, h0_p).astype(jnp.float32),
        b2=_pad2d(b2, 1, h1_p).astype(jnp.float32),
        b3=_pad2d(b3, 1, out_p).astype(jnp.float32),
    )
    return prepared, out_size


def dqn_forward(x, prepared, out_size):
    """Fused DQN forward pass.

    x: (B, input_size) float32 (un-padded feature dim).
    prepared: output of prepare_params (padded bf16 weights, f32 biases).
    Returns (B, out_size) float32.
    """
    w1, b1 = prepared["w1"], prepared["b1"]
    w2, b2 = prepared["w2"], prepared["b2"]
    w3, b3 = prepared["w3"], prepared["b3"]
    B, in_size = x.shape
    assert w1.shape[0] == in_size, "x feature dim must match w1 rows"
    out_p = w3.shape[1]

    # Batch tile: multiple of 16 sublanes (bf16), capped at 512.  When the
    # batch is big enough, force >= 2 tiles so both v7x TensorCores get work
    # from the "parallel" grid axis.
    tb = _round_up(max(B, 1), _SUBLANE_BF16)
    if B >= 2 * _SUBLANE_BF16:
        tb = min(tb, _round_up(-(-B // 2), _SUBLANE_BF16))
    tb = min(tb, _TB_CAP)
    b_pad = _round_up(B, tb)
    n_tiles = b_pad // tb

    # Only the batch dim is padded; the feature dim keeps its true width so no
    # 8x-inflated copy of x is materialized in HBM.
    x_p = x if b_pad == B else jnp.pad(x, ((0, b_pad - B), (0, 0)))

    flops = 2 * b_pad * (in_size * w1.shape[1]
                         + w2.shape[0] * w2.shape[1]
                         + w3.shape[0] * out_p)
    bytes_accessed = (
        4 * x_p.size                                     # f32 x read
        + 2 * (w1.size + w2.size + w3.size)              # bf16 weight reads
        + 4 * (b1.size + b2.size + b3.size)              # f32 biases
        + 4 * b_pad * out_p                              # f32 output write
    )

    # Weights / biases: constant block index -> DMA'd once, VMEM-resident
    # across the whole batch grid.
    def const_spec(a):
        return pl.BlockSpec(a.shape, lambda i: (0,) * a.ndim)

    out_padded = pl.pallas_call(
        dqn_kernel,
        out_shape=jax.ShapeDtypeStruct((b_pad, out_p), jnp.float32),
        grid=(n_tiles,),
        in_specs=[
            pl.BlockSpec((tb, in_size), lambda i: (i, 0)),  # x: pipelined tiles
            const_spec(w1), const_spec(b1),
            const_spec(w2), const_spec(b2),
            const_spec(w3), const_spec(b3),
        ],
        out_specs=pl.BlockSpec((tb, out_p), lambda i: (i, 0)),
        compiler_params=pltpu.CompilerParams(
            dimension_semantics=("parallel",)),
        cost_estimate=pl.CostEstimate(flops=flops, transcendentals=0,
                                      bytes_accessed=bytes_accessed),
    )(x_p, w1, b1, w2, b2, w3, b3)

    return out_padded[:B, :out_size]


def init_params(key, input_size, hidden_layer_size, output_size):
    """Deterministic init (uniform, PyTorch-Linear-like bounds), float32."""
    h0, h1 = hidden_layer_size
    ks = jax.random.split(key, 6)

    def lin(kw, kb, fan_in, fan_out):
        bound = 1.0 / jnp.sqrt(fan_in)
        w = jax.random.uniform(kw, (fan_in, fan_out), jnp.float32,
                               -bound, bound)
        b = jax.random.uniform(kb, (1, fan_out), jnp.float32, -bound, bound)
        return w, b

    w1, b1 = lin(ks[0], ks[1], input_size, h0)
    w2, b2 = lin(ks[2], ks[3], h0, h1)
    w3, b3 = lin(ks[4], ks[5], h1, output_size)
    return dict(w1=w1, b1=b1, w2=w2, b2=b2, w3=w3, b3=b3)


def dqn_reference_bf16(x, params):
    """Reference mirroring the kernel's dtype policy (bf16 MXU, f32 accum)."""
    bf = jnp.bfloat16
    h = jnp.dot(x.astype(bf), params["w1"].astype(bf),
                preferred_element_type=jnp.float32) + params["b1"]
    h = jnp.maximum(h, 0.0)
    h = jnp.dot(h.astype(bf), params["w2"].astype(bf),
                preferred_element_type=jnp.float32) + params["b2"]
    h = jnp.maximum(h, 0.0)
    return jnp.dot(h.astype(bf), params["w3"].astype(bf),
                   preferred_element_type=jnp.float32) + params["b3"]


def dqn_reference_f32(x, params):
    h = jnp.maximum(x @ params["w1"] + params["b1"], 0.0)
    h = jnp.maximum(h @ params["w2"] + params["b2"], 0.0)
    return h @ params["w3"] + params["b3"]


if __name__ == "__main__":
    key = jax.random.PRNGKey(0)
    k_x, k_p = jax.random.split(key)

    batch = 8
    input_size = 16
    hidden_layer_size = (32, 32)
    output_size = 4

    x = jax.random.normal(k_x, (batch, input_size), jnp.float32)
    params = init_params(k_p, input_size, hidden_layer_size, output_size)

    # Pad / cast weights ONCE (not on every forward call).
    prepared, out_size = prepare_params(params)
    prepared = jax.block_until_ready(prepared)

    fwd = jax.jit(dqn_forward, static_argnums=(2,))
    out = jax.block_until_ready(fwd(x, prepared, out_size))
    assert out.shape == (batch, output_size)

    ref_bf16 = dqn_reference_bf16(x, params)
    ref_f32 = dqn_reference_f32(x, params)
    assert jnp.allclose(out, ref_bf16, atol=1e-3, rtol=1e-3), "mismatch vs bf16 reference"
    assert jnp.allclose(out, ref_f32, atol=5e-2, rtol=5e-2), "mismatch vs f32 reference"

    print("KERNEL_OK")
</pallas_src>

<mosaic_0001>
module attributes {stable_mosaic.version = 11 : i64} {
  func.func @dqn_kernel(%arg0: i32, %arg1: memref<16x16xf32, #tpu.memory_space<vmem>>, %arg2: memref<16x128xbf16, #tpu.memory_space<vmem>>, %arg3: memref<1x128xf32, #tpu.memory_space<vmem>>, %arg4: memref<128x128xbf16, #tpu.memory_space<vmem>>, %arg5: memref<1x128xf32, #tpu.memory_space<vmem>>, %arg6: memref<128x128xbf16, #tpu.memory_space<vmem>>, %arg7: memref<1x128xf32, #tpu.memory_space<vmem>>, %arg8: memref<16x128xf32, #tpu.memory_space<vmem>>) attributes {dimension_semantics = [#tpu.dimension_semantics<parallel>], iteration_bounds = array<i64: 1>, scalar_prefetch = 0 : i64, scratch_operands = 0 : i64, tpu.core_type = #tpu.core_type<tc>, window_params = [{transform_indices = @transform_0, window_bounds = array<i64: 16, 16>}, {pipeline_mode = #tpu.pipeline_mode<synchronous>, transform_indices = @transform_1, window_bounds = array<i64: 16, 128>}, {pipeline_mode = #tpu.pipeline_mode<synchronous>, transform_indices = @transform_2, window_bounds = array<i64: 1, 128>}, {pipeline_mode = #tpu.pipeline_mode<synchronous>, transform_indices = @transform_3, window_bounds = array<i64: 128, 128>}, {pipeline_mode = #tpu.pipeline_mode<synchronous>, transform_indices = @transform_4, window_bounds = array<i64: 1, 128>}, {pipeline_mode = #tpu.pipeline_mode<synchronous>, transform_indices = @transform_5, window_bounds = array<i64: 128, 128>}, {pipeline_mode = #tpu.pipeline_mode<synchronous>, transform_indices = @transform_6, window_bounds = array<i64: 1, 128>}, {transform_indices = @transform_7, window_bounds = array<i64: 16, 128>}]} {
    %c0 = arith.constant 0 : index
    %c0_0 = arith.constant 0 : index
    %0 = vector.load %arg1[%c0, %c0_0] : memref<16x16xf32, #tpu.memory_space<vmem>>, vector<16x16xf32>
    %1 = arith.truncf %0 : vector<16x16xf32> to vector<16x16xbf16>
    %c0_1 = arith.constant 0 : index
    %c0_2 = arith.constant 0 : index
    %2 = vector.load %arg2[%c0_1, %c0_2] : memref<16x128xbf16, #tpu.memory_space<vmem>>, vector<16x128xbf16>
    %cst = arith.constant dense<0.000000e+00> : vector<16x128xf32>
    %3 = tpu.matmul %1, %2, %cst {dimension_numbers = #tpu.dot_dimension_numbers<[1], [0], [0], [1], [0, 0, 1, 1], [], []>} : vector<16x16xbf16>, vector<16x128xbf16>, vector<16x128xf32> -> vector<16x128xf32>
    %c0_3 = arith.constant 0 : index
    %c0_4 = arith.constant 0 : index
    %4 = vector.load %arg3[%c0_3, %c0_4] : memref<1x128xf32, #tpu.memory_space<vmem>>, vector<1x128xf32>
    %5 = vector.broadcast %4 : vector<1x128xf32> to vector<16x128xf32>
    %6 = arith.addf %3, %5 : vector<16x128xf32>
    %cst_5 = arith.constant 0.000000e+00 : f32
    %7 = vector.broadcast %cst_5 : f32 to vector<16x128xf32>
    %8 = arith.maximumf %6, %7 : vector<16x128xf32>
    %9 = arith.truncf %8 : vector<16x128xf32> to vector<16x128xbf16>
    %c0_6 = arith.constant 0 : index
    %c0_7 = arith.constant 0 : index
    %10 = vector.load %arg4[%c0_6, %c0_7] : memref<128x128xbf16, #tpu.memory_space<vmem>>, vector<128x128xbf16>
    %cst_8 = arith.constant dense<0.000000e+00> : vector<16x128xf32>
    %11 = tpu.matmul %9, %10, %cst_8 {dimension_numbers = #tpu.dot_dimension_numbers<[1], [0], [0], [1], [0, 0, 1, 1], [], []>} : vector<16x128xbf16>, vector<128x128xbf16>, vector<16x128xf32> -> vector<16x128xf32>
    %c0_9 = arith.constant 0 : index
    %c0_10 = arith.constant 0 : index
    %12 = vector.load %arg5[%c0_9, %c0_10] : memref<1x128xf32, #tpu.memory_space<vmem>>, vector<1x128xf32>
    %13 = vector.broadcast %12 : vector<1x128xf32> to vector<16x128xf32>
    %14 = arith.addf %11, %13 : vector<16x128xf32>
    %cst_11 = arith.constant 0.000000e+00 : f32
    %15 = vector.broadcast %cst_11 : f32 to vector<16x128xf32>
    %16 = arith.maximumf %14, %15 : vector<16x128xf32>
    %17 = arith.truncf %16 : vector<16x128xf32> to vector<16x128xbf16>
    %c0_12 = arith.constant 0 : index
    %c0_13 = arith.constant 0 : index
    %18 = vector.load %arg6[%c0_12, %c0_13] : memref<128x128xbf16, #tpu.memory_space<vmem>>, vector<128x128xbf16>
    %cst_14 = arith.constant dense<0.000000e+00> : vector<16x128xf32>
    %19 = tpu.matmul %17, %18, %cst_14 {dimension_numbers = #tpu.dot_dimension_numbers<[1], [0], [0], [1], [0, 0, 1, 1], [], []>} : vector<16x128xbf16>, vector<128x128xbf16>, vector<16x128xf32> -> vector<16x128xf32>
    %c0_15 = arith.constant 0 : index
    %c0_16 = arith.constant 0 : index
    %20 = vector.load %arg7[%c0_15, %c0_16] : memref<1x128xf32, #tpu.memory_space<vmem>>, vector<1x128xf32>
    %21 = vector.broadcast %20 : vector<1x128xf32> to vector<16x128xf32>
    %22 = arith.addf %19, %21 : vector<16x128xf32>
    %c0_17 = arith.constant 0 : index
    %c0_18 = arith.constant 0 : index
    %23 = vector.load %arg8[%c0_17, %c0_18] : memref<16x128xf32, #tpu.memory_space<vmem>>, vector<16x128xf32>
    tpu.vector_store %arg8[%c0_17, %c0_18], %22 {strides = array<i32>} : memref<16x128xf32, #tpu.memory_space<vmem>>, vector<16x128xf32>,
    return
  }
  func.func @transform_0(%arg0: i32) -> (i32, i32) {
    %c0_i32 = arith.constant 0 : i32
    %c0_i32_0 = arith.constant 0 : i32
    return %arg0, %c0_i32 : i32, i32
  }
  func.func @transform_1(%arg0: i32) -> (i32, i32) {
    %c0_i32 = arith.constant 0 : i32
    %c0_i32_0 = arith.constant 0 : i32
    %c0_i32_1 = arith.constant 0 : i32
    return %c0_i32, %c0_i32_0 : i32, i32
  }
  func.func @transform_2(%arg0: i32) -> (i32, i32) {
    %c0_i32 = arith.constant 0 : i32
    %c0_i32_0 = arith.constant 0 : i32
    %c0_i32_1 = arith.constant 0 : i32
    return %c0_i32, %c0_i32_0 : i32, i32
  }
  func.func @transform_3(%arg0: i32) -> (i32, i32) {
    %c0_i32 = arith.constant 0 : i32
    %c0_i32_0 = arith.constant 0 : i32
    %c0_i32_1 = arith.constant 0 : i32
    return %c0_i32, %c0_i32_0 : i32, i32
  }
  func.func @transform_4(%arg0: i32) -> (i32, i32) {
    %c0_i32 = arith.constant 0 : i32
    %c0_i32_0 = arith.constant 0 : i32
    %c0_i32_1 = arith.constant 0 : i32
    return %c0_i32, %c0_i32_0 : i32, i32
  }
  func.func @transform_5(%arg0: i32) -> (i32, i32) {
    %c0_i32 = arith.constant 0 : i32
    %c0_i32_0 = arith.constant 0 : i32
    %c0_i32_1 = arith.constant 0 : i32
    return %c0_i32, %c0_i32_0 : i32, i32
  }
  func.func @transform_6(%arg0: i32) -> (i32, i32) {
    %c0_i32 = arith.constant 0 : i32
    %c0_i32_0 = arith.constant 0 : i32
    %c0_i32_1 = arith.constant 0 : i32
    return %c0_i32, %c0_i32_0 : i32, i32
  }
  func.func @transform_7(%arg0: i32) -> (i32, i32) {
    %c0_i32 = arith.constant 0 : i32
    %c0_i32_0 = arith.constant 0 : i32
    return %arg0, %c0_i32 : i32, i32
  }
}

</mosaic_0001>

<llo_original>
// kernel: dqn_forward.1
$region0: #{dqn_forward.1}
  #allocation0 [shape = 'u32[]', space=smem, size = 0x4, offset = 0x4, fixed_abs, tag = 'smem constant byte address 0x4 - core index']
  #allocation1 [shape = 'u32[144,128]{1,0:T(1,128)}', space=vmem, size = 0x12000, scoped, tag = 'internal scratch']
  %s0 = inlined_call_operand.vmem [shape: f32[16,16], index: 0, kind: input, shape index: {}]
  %s1 = inlined_call_operand.vmem [shape: bf16[16,128], index: 1, kind: input, shape index: {}]
  %s2 = inlined_call_operand.vmem [shape: f32[1,128], index: 2, kind: input, shape index: {}]
  %s3 = inlined_call_operand.hbm [shape: bf16[128,128], index: 3, kind: input, shape index: {}]
  %s4 = inlined_call_operand.vmem [shape: f32[1,128], index: 4, kind: input, shape index: {}]
  %s5 = inlined_call_operand.hbm [shape: bf16[128,128], index: 5, kind: input, shape index: {}]
  %s6 = inlined_call_operand.vmem [shape: f32[1,128], index: 6, kind: input, shape index: {}]
  %s7 = inlined_call_operand.vmem [shape: f32[16,128], index: 7, kind: output, shape index: {}]
  %s8 = sld [smem:[#allocation0]]
  $region46: #{dqn_forward.1} parent=0
    _
  %s10 = ssub.s32 1, %s8
  %s11 = scalar_select 0, %s10, %s8
  $region1: #{dqn_forward.1} parent=0
    #allocation2 [shape = 'u8[32768]{0}', space=vmem, size = 0x8000, scoped, tag = 'input window, operand 3, single buffered']
    #allocation3 [shape = 's32[1]{0}', space=sflag, size = 0x4, scoped, tag = 'scoped memory for dqn_forward.1']
    #allocation4 [shape = 'u8[32768]{0}', space=vmem, size = 0x8000, scoped, tag = 'input window, operand 5, single buffered']
    #allocation5 [shape = 's32[1]{0}', space=sflag, size = 0x4, scoped, tag = 'scoped memory for dqn_forward.1']
    %12 = vsyncpa [#allocation3], 0
    %13 = vsyncpa [#allocation5], 0
    // Predicated region
    $region2: #{dqn_forward.1} parent=1 // pred_check
      _
    $region3: #{dqn_forward.1} parent=1 // pred_check_branch
      %15 = sbr.rel (0) target = $region5
    $region4: #{dqn_forward.1} parent=1 // pred_region
      _
    $region5: #{dqn_forward.1} parent=1 // pred_fallthru
      _
    // Predicated region
    $region6: #{dqn_forward.1} parent=1 // pred_check
      _
    $region7: #{dqn_forward.1} parent=1 // pred_check_branch
      %17 = sbr.rel (0) target = $region9
    $region8: #{dqn_forward.1} parent=1 // pred_region
      _
    $region9: #{dqn_forward.1} parent=1 // pred_fallthru
      _
    // Predicated region
    $region10: #{dqn_forward.1} parent=1 // pred_check
      _
    $region11: #{dqn_forward.1} parent=1 // pred_check_branch
      %19 = sbr.rel (0) target = $region13
    $region12: #{dqn_forward.1} parent=1 // pred_region
      _
    $region13: #{dqn_forward.1} parent=1 // pred_fallthru
      _
    // Predicated region
    $region14: #{dqn_forward.1} parent=1 // pred_check
      _
    $region15: #{dqn_forward.1} parent=1 // pred_check_branch
      %21 = sbr.rel (0) target = $region17
    $region16: #{dqn_forward.1} parent=1 // pred_region
      %s23 = ssub.s32 1024, 1024
      %24 = vsyncadd [#allocation3], %s23
      %s25 = sshll.u32 [#allocation2], 4
      %s26 = int_to_ptr.vmem [resolvable:$true] %s25
      %31 = dma.hbm_to_vmem [thread:$0]  %s3, 1024, %s26, [#allocation3], 64, 64, 4
    $region17: #{dqn_forward.1} parent=1 // pred_fallthru
      _
    // Predicated region
    $region18: #{dqn_forward.1} parent=1 // pred_check
      _
    $region19: #{dqn_forward.1} parent=1 // pred_check_branch
      %33 = sbr.rel (0) target = $region21
    $region20: #{dqn_forward.1} parent=1 // pred_region
      _
    $region21: #{dqn_forward.1} parent=1 // pred_fallthru
      _
    // Predicated region
    $region22: #{dqn_forward.1} parent=1 // pred_check
      _
    $region23: #{dqn_forward.1} parent=1 // pred_check_branch
      %35 = sbr.rel (0) target = $region25
    $region24: #{dqn_forward.1} parent=1 // pred_region
      %s37 = ssub.s32 1024, 1024
      %38 = vsyncadd [#allocation5], %s37
      %s39 = sshll.u32 [#allocation4], 4
      %s40 = int_to_ptr.vmem [resolvable:$true] %s39
      %45 = dma.hbm_to_vmem [thread:$0]  %s5, 1024, %s40, [#allocation5], 64, 64, 4
    $region25: #{dqn_forward.1} parent=1 // pred_fallthru
      _
    // Predicated region
    $region26: #{dqn_forward.1} parent=1 // pred_check
      _
    $region27: #{dqn_forward.1} parent=1 // pred_check_branch
      %47 = sbr.rel (0) target = $region29
    $region28: #{dqn_forward.1} parent=1 // pred_region
      _
    $region29: #{dqn_forward.1} parent=1 // pred_fallthru
      _
    // Predicated region
    $region30: #{dqn_forward.1} parent=1 // pred_check
      _
    $region31: #{dqn_forward.1} parent=1 // pred_check_branch
      %49 = sbr.rel (0) target = $region33
    $region32: #{dqn_forward.1} parent=1 // pred_region
      %50 = dma.done [#allocation3], 1024
    $region33: #{dqn_forward.1} parent=1 // pred_fallthru
      _
    // Predicated region
    $region34: #{dqn_forward.1} parent=1 // pred_check
      _
    $region35: #{dqn_forward.1} parent=1 // pred_check_branch
      %52 = sbr.rel (0) target = $region37
    $region36: #{dqn_forward.1} parent=1 // pred_region
      %53 = dma.done [#allocation5], 1024
    $region37: #{dqn_forward.1} parent=1 // pred_fallthru
      _
    %v55 = vld [vmem:[%s0] sm:$0xff]
    %v56 = vld [vmem:[%s0 + $0x8] sm:$0xff]
    %v57 = vpack.c.bf16 %v56, %v55
    %v58 = vld [vmem:[%s1] sm:$0xf]
    %v59 = vld [vmem:[%s1 + $0x4] sm:$0xf]
    %v60 = vld [vmem:[%s2] sm:$0x1]
    %v62 = vlaneseq
    %v63 = vshrl.u32 %v62, 7
    %v64 = vsub.s32 0, %v63
    %v65 = vrot.slane %v60, %v64
    %v69 = vunpack.c.l.b16 %v58
    %v70 = vunpack.c.l.b16 %v59
    %v71 = vpack.c.b16 %v70, %v69
    %vm73 = vcmask 130048
    %v75 = vsel %vm73, %v57, 0
    %77 = vmatprep.subr.bf16.mxu0 0
    %78 = vmatpush1.bf16.msra.mxu0 0
    %79 = vmatprep.subr.bf16.mxu0 0
    %80 = vmatpush1.bf16.msra.mxu0 0
    %81 = vmatprep.subr.bf16.mxu0 0
    %82 = vmatpush1.bf16.msra.mxu0 0
    %83 = vmatprep.subr.bf16.mxu0 0
    %84 = vmatpush1.bf16.msra.mxu0 0
    %85 = vmatprep.subr.bf16.mxu0 0
    %86 = vmatpush1.bf16.msra.mxu0 0
    %87 = vmatprep.subr.bf16.mxu0 0
    %88 = vmatpush1.bf16.msra.mxu0 0
    %89 = vmatprep.subr.bf16.mxu0 0
    %90 = vmatpush1.bf16.msra.mxu0 0
    %91 = vmatprep.subr.bf16.mxu0 0
    %92 = vmatpush1.bf16.msra.mxu0 %v71
    %93 = vmatprep.subr.bf16.mxu0 0
    %94 = vmatpush2.bf16.msra.mxu0 0
    %95 = vmatprep.subr.bf16.mxu0 0
    %96 = vmatpush2.bf16.msra.mxu0 0
    %97 = vmatprep.subr.bf16.mxu0 0
    %98 = vmatpush2.bf16.msra.mxu0 0
    %99 = vmatprep.subr.bf16.mxu0 0
    %100 = vmatpush2.bf16.msra.mxu0 0
    %101 = vmatprep.subr.bf16.mxu0 0
    %102 = vmatpush2.bf16.msra.mxu0 0
    %103 = vmatprep.subr.bf16.mxu0 0
    %104 = vmatpush2.bf16.msra.mxu0 0
    %105 = vmatprep.subr.bf16.mxu0 0
    %106 = vmatpush2.bf16.msra.mxu0 0
    %107 = vmatprep.subr.bf16.mxu0 0
    %108 = vmatpush2.bf16.msra.mxu0 0
    %109 = vmatprep.mubr.bf16.mxu0 0
    %110 = vmatmul.mubr.bf16.gmra.mxu0 %v75
    %v111 = vpop.f32.mrf.mxu0
    %v112 = vadd.f32 %v65, %v111
    %v113 = vpop.f32.mrf.mxu0
    %v114 = vpop.f32.mrf.mxu0
    %v115 = vadd.f32 %v65, %v114
    %v116 = vpop.f32.mrf.mxu0
    %117 = vdwg.mxu0
    %v118 = vmax.f32 %v112, 0.0
    %v119 = vmax.f32 %v115, 0.0
    %v120 = vpack.c.bf16 %v119, %v118
    %v121 = vld [vmem:[#allocation2] sm:$0xf]
    %v122 = vld [vmem:[#allocation2 + $0x4] sm:$0xf]
    %v123 = vld [vmem:[#allocation2 + $0x8] sm:$0xf]
    %v124 = vld [vmem:[#allocation2 + $0xc] sm:$0xf]
    %v125 = vld [vmem:[#allocation2 + $0x10] sm:$0xf]
    %v126 = vld [vmem:[#allocation2 + $0x14] sm:$0xf]
    %v127 = vld [vmem:[#allocation2 + $0x18] sm:$0xf]
    %v128 = vld [vmem:[#allocation2 + $0x1c] sm:$0xf]
    %v129 = vld [vmem:[#allocation2 + $0x20] sm:$0xf]
    %v130 = vld [vmem:[#allocation2 + $0x24] sm:$0xf]
    %v131 = vld [vmem:[#allocation2 + $0x28] sm:$0xf]
    %v132 = vld [vmem:[#allocation2 + $0x2c] sm:$0xf]
    %v133 = vld [vmem:[#allocation2 + $0x30] sm:$0xf]
    %v134 = vld [vmem:[#allocation2 + $0x34] sm:$0xf]
    %v135 = vld [vmem:[#allocation2 + $0x38] sm:$0xf]
    %v136 = vld [vmem:[#allocation2 + $0x3c] sm:$0xf]
    %v137 = vld [vmem:[%s4] sm:$0x1]
    %v139 = vlaneseq
    %v140 = vshrl.u32 %v139, 7
    %v141 = vsub.s32 0, %v140
    %v142 = vrot.slane %v137, %v141
    %v160 = vunpack.c.l.b16 %v121
    %v161 = vunpack.c.l.b16 %v122
    %v162 = vunpack.c.l.b16 %v123
    %v163 = vunpack.c.l.b16 %v124
    %v164 = vunpack.c.l.b16 %v125
    %v165 = vunpack.c.l.b16 %v126
    %v166 = vunpack.c.l.b16 %v127
    %v167 = vunpack.c.l.b16 %v128
    %v168 = vunpack.c.l.b16 %v129
    %v169 = vunpack.c.l.b16 %v130
    %v170 = vunpack.c.l.b16 %v131
    %v171 = vunpack.c.l.b16 %v132
    %v172 = vunpack.c.l.b16 %v133
    %v173 = vunpack.c.l.b16 %v134
    %v174 = vunpack.c.l.b16 %v135
    %v175 = vunpack.c.l.b16 %v136
    %v176 = vpack.c.b16 %v161, %v160
    %v177 = vpack.c.b16 %v163, %v162
    %v178 = vpack.c.b16 %v165, %v164
    %v179 = vpack.c.b16 %v167, %v166
    %v180 = vpack.c.b16 %v169, %v168
    %v181 = vpack.c.b16 %v171, %v170
    %v182 = vpack.c.b16 %v173, %v172
    %v183 = vpack.c.b16 %v175, %v174
    %192 = vmatprep.subr.bf16.mxu0 0
    %193 = vmatpush1.bf16.msra.mxu0 %v183
    %194 = vmatprep.subr.bf16.mxu0 0
    %195 = vmatpush1.bf16.msra.mxu0 %v182
    %196 = vmatprep.subr.bf16.mxu0 0
    %197 = vmatpush1.bf16.msra.mxu0 %v181
    %198 = vmatprep.subr.bf16.mxu0 0
    %199 = vmatpush1.bf16.msra.mxu0 %v180
    %200 = vmatprep.subr.bf16.mxu0 0
    %201 = vmatpush1.bf16.msra.mxu0 %v179
    %202 = vmatprep.subr.bf16.mxu0 0
    %203 = vmatpush1.bf16.msra.mxu0 %v178
    %204 = vmatprep.subr.bf16.mxu0 0
    %205 = vmatpush1.bf16.msra.mxu0 %v177
    %206 = vmatprep.subr.bf16.mxu0 0
    %207 = vmatpush1.bf16.msra.mxu0 %v176
    %208 = vmatprep.subr.bf16.mxu0 0
    %209 = vmatpush2.bf16.msra.mxu0 0
    %210 = vmatprep.subr.bf16.mxu0 0
    %211 = vmatpush2.bf16.msra.mxu0 0
    %212 = vmatprep.subr.bf16.mxu0 0
    %213 = vmatpush2.bf16.msra.mxu0 0
    %214 = vmatprep.subr.bf16.mxu0 0
    %215 = vmatpush2.bf16.msra.mxu0 0
    %216 = vmatprep.subr.bf16.mxu0 0
    %217 = vmatpush2.bf16.msra.mxu0 0
    %218 = vmatprep.subr.bf16.mxu0 0
    %219 = vmatpush2.bf16.msra.mxu0 0
    %220 = vmatprep.subr.bf16.mxu0 0
    %221 = vmatpush2.bf16.msra.mxu0 0
    %222 = vmatprep.subr.bf16.mxu0 0
    %223 = vmatpush2.bf16.msra.mxu0 0
    %224 = vmatprep.mubr.bf16.mxu0 0
    %225 = vmatmul.mubr.bf16.gmra.mxu0 %v120
    %v226 = vpop.f32.mrf.mxu0
    %v227 = vadd.f32 %v142, %v226
    %v228 = vpop.f32.mrf.mxu0
    %v229 = vpop.f32.mrf.mxu0
    %v230 = vadd.f32 %v142, %v229
    %v231 = vpop.f32.mrf.mxu0
    %232 = vdwg.mxu0
    %v233 = vmax.f32 %v227, 0.0
    %v234 = vmax.f32 %v230, 0.0
    %v235 = vpack.c.bf16 %v234, %v233
    %v236 = vld [vmem:[#allocation4] sm:$0xf]
    %v237 = vld [vmem:[#allocation4 + $0x4] sm:$0xf]
    %v238 = vld [vmem:[#allocation4 + $0x8] sm:$0xf]
    %v239 = vld [vmem:[#allocation4 + $0xc] sm:$0xf]
    %v240 = vld [vmem:[#allocation4 + $0x10] sm:$0xf]
    %v241 = vld [vmem:[#allocation4 + $0x14] sm:$0xf]
    %v242 = vld [vmem:[#allocation4 + $0x18] sm:$0xf]
    %v243 = vld [vmem:[#allocation4 + $0x1c] sm:$0xf]
    %v244 = vld [vmem:[#allocation4 + $0x20] sm:$0xf]
    %v245 = vld [vmem:[#allocation4 + $0x24] sm:$0xf]
    %v246 = vld [vmem:[#allocation4 + $0x28] sm:$0xf]
    %v247 = vld [vmem:[#allocation4 + $0x2c] sm:$0xf]
    %v248 = vld [vmem:[#allocation4 + $0x30] sm:$0xf]
    %v249 = vld [vmem:[#allocation4 + $0x34] sm:$0xf]
    %v250 = vld [vmem:[#allocation4 + $0x38] sm:$0xf]
    %v251 = vld [vmem:[#allocation4 + $0x3c] sm:$0xf]
    %v252 = vld [vmem:[%s6] sm:$0x1]
    %v254 = vlaneseq
    %v255 = vshrl.u32 %v254, 7
    %v256 = vsub.s32 0, %v255
    %v257 = vrot.slane %v252, %v256
    %v275 = vunpack.c.l.b16 %v236
    %v276 = vunpack.c.l.b16 %v237
    %v277 = vunpack.c.l.b16 %v238
    %v278 = vunpack.c.l.b16 %v239
    %v279 = vunpack.c.l.b16 %v240
    %v280 = vunpack.c.l.b16 %v241
    %v281 = vunpack.c.l.b16 %v242
    %v282 = vunpack.c.l.b16 %v243
    %v283 = vunpack.c.l.b16 %v244
    %v284 = vunpack.c.l.b16 %v245
    %v285 = vunpack.c.l.b16 %v246
    %v286 = vunpack.c.l.b16 %v247
    %v287 = vunpack.c.l.b16 %v248
    %v288 = vunpack.c.l.b16 %v249
    %v289 = vunpack.c.l.b16 %v250
    %v290 = vunpack.c.l.b16 %v251
    %v291 = vpack.c.b16 %v276, %v275
    %v292 = vpack.c.b16 %v278, %v277
    %v293 = vpack.c.b16 %v280, %v279
    %v294 = vpack.c.b16 %v282, %v281
    %v295 = vpack.c.b16 %v284, %v283
    %v296 = vpack.c.b16 %v286, %v285
    %v297 = vpack.c.b16 %v288, %v287
    %v298 = vpack.c.b16 %v290, %v289
    %307 = vmatprep.subr.bf16.mxu0 0
    %308 = vmatpush1.bf16.msra.mxu0 %v298
    %309 = vmatprep.subr.bf16.mxu0 0
    %310 = vmatpush1.bf16.msra.mxu0 %v297
    %311 = vmatprep.subr.bf16.mxu0 0
    %312 = vmatpush1.bf16.msra.mxu0 %v296
    %313 = vmatprep.subr.bf16.mxu0 0
    %314 = vmatpush1.bf16.msra.mxu0 %v295
    %315 = vmatprep.subr.bf16.mxu0 0
    %316 = vmatpush1.bf16.msra.mxu0 %v294
    %317 = vmatprep.subr.bf16.mxu0 0
    %318 = vmatpush1.bf16.msra.mxu0 %v293
    %319 = vmatprep.subr.bf16.mxu0 0
    %320 = vmatpush1.bf16.msra.mxu0 %v292
    %321 = vmatprep.subr.bf16.mxu0 0
    %322 = vmatpush1.bf16.msra.mxu0 %v291
    %323 = vmatprep.subr.bf16.mxu0 0
    %324 = vmatpush2.bf16.msra.mxu0 0
    %325 = vmatprep.subr.bf16.mxu0 0
    %326 = vmatpush2.bf16.msra.mxu0 0
    %327 = vmatprep.subr.bf16.mxu0 0
    %328 = vmatpush2.bf16.msra.mxu0 0
    %329 = vmatprep.subr.bf16.mxu0 0
    %330 = vmatpush2.bf16.msra.mxu0 0
    %331 = vmatprep.subr.bf16.mxu0 0
    %332 = vmatpush2.bf16.msra.mxu0 0
    %333 = vmatprep.subr.bf16.mxu0 0
    %334 = vmatpush2.bf16.msra.mxu0 0
    %335 = vmatprep.subr.bf16.mxu0 0
    %336 = vmatpush2.bf16.msra.mxu0 0
    %337 = vmatprep.subr.bf16.mxu0 0
    %338 = vmatpush2.bf16.msra.mxu0 0
    %339 = vmatprep.mubr.bf16.mxu0 0
    %340 = vmatmul.mubr.bf16.gmra.mxu0 %v235
    %v341 = vpop.f32.mrf.mxu0
    %v342 = vadd.f32 %v257, %v341
    %v343 = vpop.f32.mrf.mxu0
    %v344 = vpop.f32.mrf.mxu0
    %v345 = vadd.f32 %v257, %v344
    %v346 = vpop.f32.mrf.mxu0
    %347 = vdwg.mxu0
    %348 = vst [vmem:[%s7] sm:$0xff] %v342
    %349 = vst [vmem:[%s7 + $0x8] sm:$0xff] %v345
    // Predicated region
    $region38: #{dqn_forward.1} parent=1 // pred_check
      _
    $region39: #{dqn_forward.1} parent=1 // pred_check_branch
      %351 = sbr.rel (0) target = $region41
    $region40: #{dqn_forward.1} parent=1 // pred_region
      _
    $region41: #{dqn_forward.1} parent=1 // pred_fallthru
      _
    // Predicated region
    $region42: #{dqn_forward.1} parent=1 // pred_check
      _
    $region43: #{dqn_forward.1} parent=1 // pred_check_branch
      %353 = sbr.rel (0) target = $region45
    $region44: #{dqn_forward.1} parent=1 // pred_region
      _
    $region45: #{dqn_forward.1} parent=1 // pred_fallthru
      _
    %354 = vsyncpa [#allocation3], 1
    %355 = vsyncpa [#allocation5], 1

</llo_original>
